<compile_context>
chip_gen: v6e
topology: v6e:2x2x1
jax: 0.10.0
libtpu: 0.0.40
codegen_flags: <defaults>
</compile_context>

<pallas_src>
import jax
import jax.numpy as jnp
from jax import lax
from jax.experimental import pallas as pl
from jax.experimental.pallas import tpu as pltpu


def bow_attn_kernel(tok_ref, expscore_ref, emb_ref, out_ref):
    # tok_ref:      (TB, T) int32    token ids for this tile of batch rows
    # expscore_ref: (1, V)  f32      exp(tanh(emb @ w^T + b) - global_max) per vocab id
    # emb_ref:      (V, D)  bf16/f32 frozen embedding table (constant index map)
    # out_ref:      (TB, D) f32      attention-pooled outputs for this tile
    TB, T = tok_ref.shape
    V = emb_ref.shape[0]

    tok = tok_ref[...]                                         # (TB, T) int32
    # 2-D iota along lanes; broadcasting happens inside the compare (no 3-D temp).
    iota_v = lax.broadcasted_iota(jnp.int32, (1, V), 1)        # (1, V)
    # Hoisted sublane broadcast of the per-vocab exp-scores (JAX does not CSE
    # broadcast_in_dim, so do it once outside the unrolled loop).
    exp_b = jnp.broadcast_to(expscore_ref[...], (TB, V))       # (TB, V) f32

    # Accumulate the softmax-weighted one-hot in a lane-dense (TB, V) f32 tile,
    # one cheap VALU pass (compare + select + add) per sequence position.
    # T is small and static, so a Python loop unrolls fully.
    w = jnp.zeros((TB, V), jnp.float32)
    for t in range(T):
        mask = tok[:, t:t + 1] == iota_v                       # (TB, V) bool
        w = w + jnp.where(mask, exp_b, 0.0)

    # Softmax denominator per batch row: single cross-lane reduce per grid step.
    # NOTE: out-of-range token ids match no vocab column and simply contribute
    # nothing (the demo only uses valid ids, matching the PyTorch gather).
    denom = jnp.sum(w, axis=1, keepdims=True)                  # (TB, 1)

    # One well-shaped (TB, V) @ (V, D) MXU matmul per batch tile; bf16 operands
    # take the fast MXU path with f32 accumulation.
    pooled = jnp.dot(w.astype(emb_ref.dtype), emb_ref[...],
                     preferred_element_type=jnp.float32)       # (TB, D) f32

    # Exact reciprocal: only TB values per step, approx=True would just add error.
    inv = pl.reciprocal(denom, approx=False)                   # (TB, 1)

    # TODO(synk): for D < 128 this (TB, D) store is a masked vst; packing 4 batch
    # rows per 128-lane output row would make it lane-dense, but output bytes are
    # tiny relative to the VALU/MXU work at these sizes.
    out_ref[...] = (pooled * inv).astype(out_ref.dtype)


def bag_of_words_pretrained(x, emb_table, attn_w, attn_b, *, batch_tile=128):
    """Forward pass of BagOfWordsPretrained.

    x:         (B, T) int32 token ids
    emb_table: (V, D) pretrained embeddings (bf16 recommended for the fast MXU path)
    attn_w:    (1, D) f32  nn.Linear(D, 1).weight
    attn_b:    (1, 1) f32  nn.Linear(D, 1).bias
    returns:   (B, D) f32
    """
    B, T = x.shape
    V, D = emb_table.shape
    if B % batch_tile != 0:
        raise ValueError(f"batch {B} must be divisible by batch_tile {batch_tile}")

    # Per-vocab exp-scores precomputed once (tiny wrapper-side XLA op). Softmax
    # over T is shift-invariant, so subtracting the global max here gives an
    # exactly equivalent softmax and keeps exp() safe; the kernel never sees the
    # Linear/tanh/exp at all.
    emb_f32 = emb_table.astype(jnp.float32)
    logits = jnp.tanh(
        jnp.dot(emb_f32, attn_w.astype(jnp.float32).reshape(D, 1))
        + attn_b.astype(jnp.float32).reshape(1, 1)
    )                                                          # (V, 1)
    exp_scores = jnp.exp(logits - jnp.max(logits)).reshape(1, V)

    grid = (B // batch_tile,)
    return pl.pallas_call(
        bow_attn_kernel,
        out_shape=jax.ShapeDtypeStruct((B, D), jnp.float32),
        grid_spec=pltpu.PrefetchScalarGridSpec(
            num_scalar_prefetch=0,
            grid=grid,
            in_specs=[
                pl.BlockSpec((batch_tile, T), lambda i: (i, 0)),  # token tile
                pl.BlockSpec((1, V), lambda i: (0, 0)),           # per-vocab exp-scores
                pl.BlockSpec((V, D), lambda i: (0, 0)),           # embedding table
            ],
            out_specs=pl.BlockSpec((batch_tile, D), lambda i: (i, 0)),
        ),
        compiler_params=pltpu.CompilerParams(
            # parallel batch-tile axis: megacore sharding on v7x's 2 TensorCores
            # (grid must have >= 2 steps for that to pay off).
            dimension_semantics=("parallel",),
            # 32 MiB is safe on every generation incl. v7x (64 MiB physical);
            # raise toward 64-100 MiB on v5e/v6e if the resident table grows.
            vmem_limit_bytes=32 * 1024 * 1024,
        ),
    )(x, exp_scores, emb_table)


def reference(x, emb_table, attn_w, attn_b):
    e = emb_table[x]                                                # (B, T, D)
    scores = jnp.einsum("btd,od->bto", e, attn_w) + attn_b[0, 0]    # (B, T, 1)
    att = jnp.tanh(scores)
    att = jax.nn.softmax(att, axis=1)
    return jnp.sum(att * e, axis=1)                                 # (B, D)


if __name__ == "__main__":
    # Small demo shapes consistent with the module; batch sized so the grid has
    # 2 full 128-row tiles (full MXU height, and 2 "parallel" steps for v7x).
    B, T, V, D = 256, 8, 64, 32        # batch, max_length, vocab size, hidden_dims
    TB = 128                            # batch tile per grid step (2 grid steps)
    PAD_IDX = 1                         # torchtext-style <pad> index

    key = jax.random.PRNGKey(0)
    k_emb, k_tok, k_w, k_b = jax.random.split(key, 4)

    # Deterministic "pretrained" embedding table; pad row zeroed (padding_idx).
    emb_f32 = jax.random.normal(k_emb, (V, D), dtype=jnp.float32) * 0.1
    emb_f32 = emb_f32.at[PAD_IDX].set(0.0)
    emb_bf16 = emb_f32.astype(jnp.bfloat16)   # fast MXU path, half the VMEM

    # Attn linear parameters: weight (1, D), bias (1, 1).
    attn_w = jax.random.normal(k_w, (1, D), dtype=jnp.float32) * (D ** -0.5)
    attn_b = jax.random.normal(k_b, (1, 1), dtype=jnp.float32) * 0.01

    # Token ids (B, T), all in-range.
    x = jax.random.randint(k_tok, (B, T), 0, V, dtype=jnp.int32)

    out = bag_of_words_pretrained(x, emb_bf16, attn_w, attn_b, batch_tile=TB)
    out = jax.block_until_ready(out)

    # Reference uses the same bf16-rounded table (the table quantization is an
    # input choice, not a kernel error); remaining delta is the bf16 cast of the
    # softmax weights at the MXU dot.
    ref = reference(x, emb_bf16.astype(jnp.float32), attn_w, attn_b)
    assert out.shape == (B, D) and out.dtype == jnp.float32
    assert jnp.allclose(out, ref, atol=2e-3, rtol=2e-3), "mismatch vs reference"

    print("KERNEL_OK")
</pallas_src>

<mosaic_0001>
module attributes {stable_mosaic.version = 11 : i64} {
  func.func @bow_attn_kernel(%arg0: i32, %arg1: memref<128x8xi32, #tpu.memory_space<vmem>>, %arg2: memref<1x64xf32, #tpu.memory_space<vmem>>, %arg3: memref<64x32xbf16, #tpu.memory_space<vmem>>, %arg4: memref<128x32xf32, #tpu.memory_space<vmem>>) attributes {dimension_semantics = [#tpu.dimension_semantics<parallel>], iteration_bounds = array<i64: 2>, scalar_prefetch = 0 : i64, scratch_operands = 0 : i64, tpu.core_type = #tpu.core_type<tc>, window_params = [{transform_indices = @transform_0, window_bounds = array<i64: 128, 8>}, {pipeline_mode = #tpu.pipeline_mode<synchronous>, transform_indices = @transform_1, window_bounds = array<i64: 1, 64>}, {pipeline_mode = #tpu.pipeline_mode<synchronous>, transform_indices = @transform_2, window_bounds = array<i64: 64, 32>}, {transform_indices = @transform_3, window_bounds = array<i64: 128, 32>}]} {
    %c0 = arith.constant 0 : index
    %c0_0 = arith.constant 0 : index
    %0 = vector.load %arg1[%c0, %c0_0] : memref<128x8xi32, #tpu.memory_space<vmem>>, vector<128x8xi32>
    %1 = tpu.iota {dimensions = array<i32: 1>} : vector<1x64xi32>
    %c0_1 = arith.constant 0 : index
    %c0_2 = arith.constant 0 : index
    %2 = vector.load %arg2[%c0_1, %c0_2] : memref<1x64xf32, #tpu.memory_space<vmem>>, vector<1x64xf32>
    %3 = vector.shape_cast %2 : vector<1x64xf32> to vector<1x64xf32>
    %4 = vector.broadcast %3 : vector<1x64xf32> to vector<128x64xf32>
    %cst = arith.constant 0.000000e+00 : f32
    %5 = vector.broadcast %cst : f32 to vector<128x64xf32>
    %6 = vector.extract_strided_slice %0 {offsets = [0, 0], sizes = [128, 1], strides = [1, 1]} : vector<128x8xi32> to vector<128x1xi32>
    %7 = vector.broadcast %6 : vector<128x1xi32> to vector<128x64xi32>
    %8 = vector.broadcast %1 : vector<1x64xi32> to vector<128x64xi32>
    %9 = arith.cmpi eq, %7, %8 : vector<128x64xi32>
    %cst_3 = arith.constant 0.000000e+00 : f32
    %10 = vector.broadcast %cst_3 : f32 to vector<128x64xf32>
    %11 = arith.select %9, %4, %10 : vector<128x64xi1>, vector<128x64xf32>
    %12 = arith.addf %5, %11 : vector<128x64xf32>
    %13 = vector.extract_strided_slice %0 {offsets = [0, 1], sizes = [128, 1], strides = [1, 1]} : vector<128x8xi32> to vector<128x1xi32>
    %14 = vector.broadcast %13 : vector<128x1xi32> to vector<128x64xi32>
    %15 = vector.broadcast %1 : vector<1x64xi32> to vector<128x64xi32>
    %16 = arith.cmpi eq, %14, %15 : vector<128x64xi32>
    %cst_4 = arith.constant 0.000000e+00 : f32
    %17 = vector.broadcast %cst_4 : f32 to vector<128x64xf32>
    %18 = arith.select %16, %4, %17 : vector<128x64xi1>, vector<128x64xf32>
    %19 = arith.addf %12, %18 : vector<128x64xf32>
    %20 = vector.extract_strided_slice %0 {offsets = [0, 2], sizes = [128, 1], strides = [1, 1]} : vector<128x8xi32> to vector<128x1xi32>
    %21 = vector.broadcast %20 : vector<128x1xi32> to vector<128x64xi32>
    %22 = vector.broadcast %1 : vector<1x64xi32> to vector<128x64xi32>
    %23 = arith.cmpi eq, %21, %22 : vector<128x64xi32>
    %cst_5 = arith.constant 0.000000e+00 : f32
    %24 = vector.broadcast %cst_5 : f32 to vector<128x64xf32>
    %25 = arith.select %23, %4, %24 : vector<128x64xi1>, vector<128x64xf32>
    %26 = arith.addf %19, %25 : vector<128x64xf32>
    %27 = vector.extract_strided_slice %0 {offsets = [0, 3], sizes = [128, 1], strides = [1, 1]} : vector<128x8xi32> to vector<128x1xi32>
    %28 = vector.broadcast %27 : vector<128x1xi32> to vector<128x64xi32>
    %29 = vector.broadcast %1 : vector<1x64xi32> to vector<128x64xi32>
    %30 = arith.cmpi eq, %28, %29 : vector<128x64xi32>
    %cst_6 = arith.constant 0.000000e+00 : f32
    %31 = vector.broadcast %cst_6 : f32 to vector<128x64xf32>
    %32 = arith.select %30, %4, %31 : vector<128x64xi1>, vector<128x64xf32>
    %33 = arith.addf %26, %32 : vector<128x64xf32>
    %34 = vector.extract_strided_slice %0 {offsets = [0, 4], sizes = [128, 1], strides = [1, 1]} : vector<128x8xi32> to vector<128x1xi32>
    %35 = vector.broadcast %34 : vector<128x1xi32> to vector<128x64xi32>
    %36 = vector.broadcast %1 : vector<1x64xi32> to vector<128x64xi32>
    %37 = arith.cmpi eq, %35, %36 : vector<128x64xi32>
    %cst_7 = arith.constant 0.000000e+00 : f32
    %38 = vector.broadcast %cst_7 : f32 to vector<128x64xf32>
    %39 = arith.select %37, %4, %38 : vector<128x64xi1>, vector<128x64xf32>
    %40 = arith.addf %33, %39 : vector<128x64xf32>
    %41 = vector.extract_strided_slice %0 {offsets = [0, 5], sizes = [128, 1], strides = [1, 1]} : vector<128x8xi32> to vector<128x1xi32>
    %42 = vector.broadcast %41 : vector<128x1xi32> to vector<128x64xi32>
    %43 = vector.broadcast %1 : vector<1x64xi32> to vector<128x64xi32>
    %44 = arith.cmpi eq, %42, %43 : vector<128x64xi32>
    %cst_8 = arith.constant 0.000000e+00 : f32
    %45 = vector.broadcast %cst_8 : f32 to vector<128x64xf32>
    %46 = arith.select %44, %4, %45 : vector<128x64xi1>, vector<128x64xf32>
    %47 = arith.addf %40, %46 : vector<128x64xf32>
    %48 = vector.extract_strided_slice %0 {offsets = [0, 6], sizes = [128, 1], strides = [1, 1]} : vector<128x8xi32> to vector<128x1xi32>
    %49 = vector.broadcast %48 : vector<128x1xi32> to vector<128x64xi32>
    %50 = vector.broadcast %1 : vector<1x64xi32> to vector<128x64xi32>
    %51 = arith.cmpi eq, %49, %50 : vector<128x64xi32>
    %cst_9 = arith.constant 0.000000e+00 : f32
    %52 = vector.broadcast %cst_9 : f32 to vector<128x64xf32>
    %53 = arith.select %51, %4, %52 : vector<128x64xi1>, vector<128x64xf32>
    %54 = arith.addf %47, %53 : vector<128x64xf32>
    %55 = vector.extract_strided_slice %0 {offsets = [0, 7], sizes = [128, 1], strides = [1, 1]} : vector<128x8xi32> to vector<128x1xi32>
    %56 = vector.broadcast %55 : vector<128x1xi32> to vector<128x64xi32>
    %57 = vector.broadcast %1 : vector<1x64xi32> to vector<128x64xi32>
    %58 = arith.cmpi eq, %56, %57 : vector<128x64xi32>
    %cst_10 = arith.constant 0.000000e+00 : f32
    %59 = vector.broadcast %cst_10 : f32 to vector<128x64xf32>
    %60 = arith.select %58, %4, %59 : vector<128x64xi1>, vector<128x64xf32>
    %61 = arith.addf %54, %60 : vector<128x64xf32>
    %cst_11 = arith.constant dense<0.000000e+00> : vector<128xf32>
    %62 = vector.multi_reduction <add>, %61, %cst_11 [1] : vector<128x64xf32> to vector<128xf32>
    %63 = vector.shape_cast %62 : vector<128xf32> to vector<128x1xf32>
    %64 = arith.truncf %61 : vector<128x64xf32> to vector<128x64xbf16>
    %c0_12 = arith.constant 0 : index
    %c0_13 = arith.constant 0 : index
    %65 = vector.load %arg3[%c0_12, %c0_13] : memref<64x32xbf16, #tpu.memory_space<vmem>>, vector<64x32xbf16>
    %cst_14 = arith.constant dense<0.000000e+00> : vector<128x32xf32>
    %66 = tpu.matmul %64, %65, %cst_14 {dimension_numbers = #tpu.dot_dimension_numbers<[1], [0], [0], [1], [0, 0, 1, 1], [], []>} : vector<128x64xbf16>, vector<64x32xbf16>, vector<128x32xf32> -> vector<128x32xf32>
    %67 = tpu.reciprocal %63 : vector<128x1xf32> -> vector<128x1xf32>
    %68 = vector.broadcast %67 : vector<128x1xf32> to vector<128x32xf32>
    %69 = arith.mulf %66, %68 : vector<128x32xf32>
    %c0_15 = arith.constant 0 : index
    %c0_16 = arith.constant 0 : index
    %70 = vector.load %arg4[%c0_15, %c0_16] : memref<128x32xf32, #tpu.memory_space<vmem>>, vector<128x32xf32>
    tpu.vector_store %arg4[%c0_15, %c0_16], %69 {strides = array<i32>} : memref<128x32xf32, #tpu.memory_space<vmem>>, vector<128x32xf32>,
    return
  }
  func.func @transform_0(%arg0: i32) -> (i32, i32) {
    %c0_i32 = arith.constant 0 : i32
    %c0_i32_0 = arith.constant 0 : i32
    return %arg0, %c0_i32 : i32, i32
  }
  func.func @transform_1(%arg0: i32) -> (i32, i32) {
    %c0_i32 = arith.constant 0 : i32
    %c0_i32_0 = arith.constant 0 : i32
    %c0_i32_1 = arith.constant 0 : i32
    return %c0_i32, %c0_i32_0 : i32, i32
  }
  func.func @transform_2(%arg0: i32) -> (i32, i32) {
    %c0_i32 = arith.constant 0 : i32
    %c0_i32_0 = arith.constant 0 : i32
    %c0_i32_1 = arith.constant 0 : i32
    return %c0_i32, %c0_i32_0 : i32, i32
  }
  func.func @transform_3(%arg0: i32) -> (i32, i32) {
    %c0_i32 = arith.constant 0 : i32
    %c0_i32_0 = arith.constant 0 : i32
    return %arg0, %c0_i32 : i32, i32
  }
}

</mosaic_0001>

<llo_original>
// kernel: tpu_custom_call.1
$region0: #{tpu_custom_call.1}
  #allocation0 [shape = 'u32[]', space=smem, size = 0x4, offset = 0x4, fixed_abs, tag = 'smem constant byte address 0x4 - core index']
  #allocation1 [shape = 'u32[144,128]{1,0:T(1,128)}', space=vmem, size = 0x12000, scoped, tag = 'internal scratch']
  %s0 = inlined_call_operand.vmem [shape: s32[256,8], index: 0, kind: input, shape index: {}]
  %s1 = inlined_call_operand.vmem [shape: f32[1,64], index: 1, kind: input, shape index: {}]
  %s2 = inlined_call_operand.vmem [shape: bf16[64,32], index: 2, kind: input, shape index: {}]
  %s3 = inlined_call_operand.vmem [shape: f32[256,32], index: 3, kind: output, shape index: {}]
  %s4 = sld [smem:[#allocation0]]
  $region45: #{tpu_custom_call.1} parent=0
    _
  %s6 = ssub.s32 1, %s4
  %s7 = scalar_select 0, %s6, %s4
  loop: start=0, step=1, limit=4
  $region2: #{tpu_custom_call.1} parent=0 // loop_pre_header
    _
  $region3: #{tpu_custom_call.1} parent=0 // loop_header
    %s9 = sphi 0, %s13
    %p10 = scmp.ge.s32.totalorder %s9, 4
    %s19 = sphi 0, %s21
    %s22 = sphi 0, %s19
    %s23 = sphi 0, %s22
    %s39 = sphi 0, %s23
    %s43 = sphi 0, %s43
    %s45 = sphi 0, %s43
    %s46 = sphi 0, %s45
    %s60 = sphi 0, %s46
    %s64 = sphi 0, %s64
    %s66 = sphi 0, %s64
    %s67 = sphi 0, %s66
    %s81 = sphi 0, %s67
    %s87 = sphi 0, %s89
    %s90 = sphi 0, %s87
    %s91 = sphi 0, %s90
    %s107 = sphi 0, %s91
  $region4: #{tpu_custom_call.1} parent=0 // loop_header_branch
    %12 = sbr.rel (%p10) target = $region8
  $region5: #{tpu_custom_call.1} parent=0 // loop_body
    %s14 = ssub.s32 %s9, 1
    %s15 = ssub.s32 %s9, 2
    %s16 = sadd.s32 %s9, 1
    %s17 = ssub.s32 %s9, %s16
    %p18 = scmp.eq.s32.totalorder %s17, 0
    %s20 = sadd.s32 %s19, 1
    %s21 = scalar_select %p18, %s19, %s20
    %p24 = pneg %p18
    %p25 = scmp.eq.s32.totalorder %s9, 1
    %p26 = por %p24, %p25
    %p27 = scmp.ne.s32.totalorder %s19, %s22
    %p28 = scmp.eq.s32.totalorder %s9, 0
    %p29 = por %p27, %p28
    %p30 = scmp.ne.s32.totalorder %s19, %s22
    %p31 = scmp.eq.s32.totalorder %s14, 1
    %p32 = por %p30, %p31
    %p33 = scmp.ne.s32.totalorder %s22, %s23
    %p34 = scmp.eq.s32.totalorder %s14, 0
    %p35 = por %p33, %p34
    %p36 = scmp.ne.s32.totalorder %s22, %s23
    %p37 = scmp.eq.s32.totalorder %s15, 1
    %p38 = por %p36, %p37
    %p40 = scmp.ne.s32.totalorder %s23, %s39
    %p41 = scmp.eq.s32.totalorder %s15, 0
    %p42 = por %p40, %p41
    %s44 = sadd.s32 %s43, 1
    %p47 = scmp.eq.s32.totalorder %s9, 1
    %p48 = scmp.ne.s32.totalorder %s43, %s45
    %p49 = scmp.eq.s32.totalorder %s9, 0
    %p50 = por %p48, %p49
    %p51 = scmp.ne.s32.totalorder %s43, %s45
    %p52 = scmp.eq.s32.totalorder %s14, 1
    %p53 = por %p51, %p52
    %p54 = scmp.ne.s32.totalorder %s45, %s46
    %p55 = scmp.eq.s32.totalorder %s14, 0
    %p56 = por %p54, %p55
    %p57 = scmp.ne.s32.totalorder %s45, %s46
    %p58 = scmp.eq.s32.totalorder %s15, 1
    %p59 = por %p57, %p58
    %p61 = scmp.ne.s32.totalorder %s46, %s60
    %p62 = scmp.eq.s32.totalorder %s15, 0
    %p63 = por %p61, %p62
    %s65 = sadd.s32 %s64, 1
    %p68 = scmp.eq.s32.totalorder %s9, 1
    %p69 = scmp.ne.s32.totalorder %s64, %s66
    %p70 = scmp.eq.s32.totalorder %s9, 0
    %p71 = por %p69, %p70
    %p72 = scmp.ne.s32.totalorder %s64, %s66
    %p73 = scmp.eq.s32.totalorder %s14, 1
    %p74 = por %p72, %p73
    %p75 = scmp.ne.s32.totalorder %s66, %s67
    %p76 = scmp.eq.s32.totalorder %s14, 0
    %p77 = por %p75, %p76
    %p78 = scmp.ne.s32.totalorder %s66, %s67
    %p79 = scmp.eq.s32.totalorder %s15, 1
    %p80 = por %p78, %p79
    %p82 = scmp.ne.s32.totalorder %s67, %s81
    %p83 = scmp.eq.s32.totalorder %s15, 0
    %p84 = por %p82, %p83
    %s85 = ssub.s32 %s9, %s16
    %p86 = scmp.eq.s32.totalorder %s85, 0
    %s88 = sadd.s32 %s87, 1
    %s89 = scalar_select %p86, %s87, %s88
    %p92 = pneg %p86
    %p93 = scmp.eq.s32.totalorder %s9, 1
    %p94 = por %p92, %p93
    %p95 = scmp.ne.s32.totalorder %s87, %s90
    %p96 = scmp.eq.s32.totalorder %s9, 0
    %p97 = por %p95, %p96
    %p98 = scmp.ne.s32.totalorder %s87, %s90
    %p99 = scmp.eq.s32.totalorder %s14, 1
    %p100 = por %p98, %p99
    %p101 = scmp.ne.s32.totalorder %s90, %s91
    %p102 = scmp.eq.s32.totalorder %s14, 0
    %p103 = por %p101, %p102
    %p104 = scmp.ne.s32.totalorder %s90, %s91
    %p105 = scmp.eq.s32.totalorder %s15, 1
    %p106 = por %p104, %p105
    %p108 = scmp.ne.s32.totalorder %s91, %s107
    %p109 = scmp.eq.s32.totalorder %s15, 0
    %p110 = por %p108, %p109
    %p111 = scmp.le.s32.totalorder 1, %s9
    %p112 = scmp.lt.s32.totalorder %s9, 3
    %p113 = pnand %p111, %p112
    %p114 = pneg %p113
    // Predicated region
    $region9: #{tpu_custom_call.1} parent=5 // pred_check
      _
    $region10: #{tpu_custom_call.1} parent=5 // pred_check_branch
      %116 = sbr.rel (%p113) target = $region12
    $region11: #{tpu_custom_call.1} parent=5 // pred_region
      %s117 = ssub.s32 %s9, 1
      // Predicated region
      $region13: #{tpu_custom_call.1} parent=11 // pred_check
        %p118 = pneg %p56
      $region14: #{tpu_custom_call.1} parent=11 // pred_check_branch
        %120 = sbr.rel (%p118) target = $region16
      $region15: #{tpu_custom_call.1} parent=11 // pred_region
        _
      $region16: #{tpu_custom_call.1} parent=11 // pred_fallthru
        _
      // Predicated region
      $region17: #{tpu_custom_call.1} parent=11 // pred_check
        %p121 = pneg %p77
      $region18: #{tpu_custom_call.1} parent=11 // pred_check_branch
        %123 = sbr.rel (%p121) target = $region20
      $region19: #{tpu_custom_call.1} parent=11 // pred_region
        _
      $region20: #{tpu_custom_call.1} parent=11 // pred_fallthru
        _
    $region12: #{tpu_custom_call.1} parent=5 // pred_fallthru
      _
    %p124 = scmp.lt.s32.totalorder %s9, 2
    // Predicated region
    $region21: #{tpu_custom_call.1} parent=5 // pred_check
      %p125 = pneg %p124
    $region22: #{tpu_custom_call.1} parent=5 // pred_check_branch
      %127 = sbr.rel (%p125) target = $region24
    $region23: #{tpu_custom_call.1} parent=5 // pred_region
      // Predicated region
      $region25: #{tpu_custom_call.1} parent=23 // pred_check
        %p128 = pneg %p29
      $region26: #{tpu_custom_call.1} parent=23 // pred_check_branch
        %130 = sbr.rel (%p128) target = $region28
      $region27: #{tpu_custom_call.1} parent=23 // pred_region
        %s131 = smul.u32 16, %s9
        %p132 = scmp.lt.s32.totalorder %s131, 31
        %s133 = scalar_select %p132, %s131, 31
        %s134 = smul.addr %s133, 8
        %s135 = scalar_lea.vmem %s0, %s134
        %s136 = smul.u32 16, %s9
      $region28: #{tpu_custom_call.1} parent=23 // pred_fallthru
        _
    $region24: #{tpu_custom_call.1} parent=5 // pred_fallthru
      _
    %p137 = scmp.le.s32.totalorder 1, %s9
    %p138 = scmp.lt.s32.totalorder %s9, 3
    %p139 = pnand %p137, %p138
    %p140 = pneg %p139
    // Predicated region
    $region29: #{tpu_custom_call.1} parent=5 // pred_check
      _
    $region30: #{tpu_custom_call.1} parent=5 // pred_check_branch
      %142 = sbr.rel (%p139) target = $region32
    $region31: #{tpu_custom_call.1} parent=5 // pred_region
      %s143 = ssub.s32 %s9, 1
      %s144 = smul.u32 16, %s14
      %p145 = scmp.lt.s32.totalorder %s144, 31
      %s146 = scalar_select %p145, %s144, 31
      %s147 = smul.addr %s146, 8
      %s148 = scalar_lea.vmem %s0, %s147
      %p149 = pneg %p35
      %p150 = pneg %p32
      %p151 = pneg %p56
      %p152 = pneg %p53
      %p153 = pneg %p77
      %p154 = pneg %p74
      %p155 = pneg %p103
      %p156 = pneg %p100
      %s157 = smul.u32 16, %s14
      %p158 = scmp.lt.s32.totalorder %s157, 31
      %s159 = scalar_select %p158, %s157, 31
      %s160 = smul.addr %s159, 8
      %s161 = scalar_lea.vmem %s3, %s160
      %s162 = smul.u32 16, %s14
      %p163 = scmp.lt.s32.totalorder %s162, 31
      %s164 = scalar_select %p163, %s162, 31
      %s165 = smul.addr %s164, 8
      %s166 = scalar_lea.vmem %s0, %s165
      %s167 = smul.u32 16, %s14
      %s168 = smul.u32 16, %s14
      %p169 = scmp.lt.s32.totalorder %s168, 31
      %s170 = scalar_select %p169, %s168, 31
      %s171 = smul.addr %s170, 8
      %s172 = scalar_lea.vmem %s3, %s171
      %s173 = smul.u32 16, %s14
      %v175 = vld [vmem:[%s166] sm:$0xff]
      %v176 = vld [vmem:[%s166 + $0x8] sm:$0xff]
      %v177 = vld [vmem:[%s166 + $0x10] sm:$0xff]
      %v178 = vld [vmem:[%s166 + $0x18] sm:$0xff]
      %v179 = vld [vmem:[%s166 + $0x20] sm:$0xff]
      %v180 = vld [vmem:[%s166 + $0x28] sm:$0xff]
      %v181 = vld [vmem:[%s166 + $0x30] sm:$0xff]
      %v182 = vld [vmem:[%s166 + $0x38] sm:$0xff]
      %v183 = vld [vmem:[%s166 + $0x40] sm:$0xff]
      %v184 = vld [vmem:[%s166 + $0x48] sm:$0xff]
      %v185 = vld [vmem:[%s166 + $0x50] sm:$0xff]
      %v186 = vld [vmem:[%s166 + $0x58] sm:$0xff]
      %v187 = vld [vmem:[%s166 + $0x60] sm:$0xff]
      %v188 = vld [vmem:[%s166 + $0x68] sm:$0xff]
      %v189 = vld [vmem:[%s166 + $0x70] sm:$0xff]
      %v190 = vld [vmem:[%s166 + $0x78] sm:$0xff]
      %v191 = vlaneseq
      %v192 = vand.u32 %v191, 127
      %v193 = vld [vmem:[%s1] sm:$0x1]
      %v195 = vlaneseq
      %v196 = vshrl.u32 %v195, 7
      %v197 = vsub.s32 0, %v196
      %v198 = vrot.slane %v193, %v197
      %200 = vset.pattern.permute.xlu0 0
      %201 = vperm.xlu0 %200, %v175
      %v202 = vpop.permute.xlu0 %201
      %203 = vset.pattern.permute.xlu0 0
      %204 = vperm.xlu0 %203, %v176
      %v205 = vpop.permute.xlu0 %204
      %206 = vset.pattern.permute.xlu0 0
      %207 = vperm.xlu0 %206, %v177
      %v208 = vpop.permute.xlu0 %207
      %209 = vset.pattern.permute.xlu0 0
      %210 = vperm.xlu0 %209, %v178
      %v211 = vpop.permute.xlu0 %210
      %212 = vset.pattern.permute.xlu0 0
      %213 = vperm.xlu0 %212, %v179
      %v214 = vpop.permute.xlu0 %213
      %215 = vset.pattern.permute.xlu0 0
      %216 = vperm.xlu0 %215, %v180
      %v217 = vpop.permute.xlu0 %216
      %218 = vset.pattern.permute.xlu0 0
      %219 = vperm.xlu0 %218, %v181
      %v220 = vpop.permute.xlu0 %219
      %221 = vset.pattern.permute.xlu0 0
      %222 = vperm.xlu0 %221, %v182
      %v223 = vpop.permute.xlu0 %222
      %224 = vset.pattern.permute.xlu0 0
      %225 = vperm.xlu0 %224, %v183
      %v226 = vpop.permute.xlu0 %225
      %227 = vset.pattern.permute.xlu0 0
      %228 = vperm.xlu0 %227, %v184
      %v229 = vpop.permute.xlu0 %228
      %230 = vset.pattern.permute.xlu0 0
      %231 = vperm.xlu0 %230, %v185
      %v232 = vpop.permute.xlu0 %231
      %233 = vset.pattern.permute.xlu0 0
      %234 = vperm.xlu0 %233, %v186
      %v235 = vpop.permute.xlu0 %234
      %236 = vset.pattern.permute.xlu0 0
      %237 = vperm.xlu0 %236, %v187
      %v238 = vpop.permute.xlu0 %237
      %239 = vset.pattern.permute.xlu0 0
      %240 = vperm.xlu0 %239, %v188
      %v241 = vpop.permute.xlu0 %240
      %242 = vset.pattern.permute.xlu0 0
      %243 = vperm.xlu0 %242, %v189
      %v244 = vpop.permute.xlu0 %243
      %245 = vset.pattern.permute.xlu0 0
      %246 = vperm.xlu0 %245, %v190
      %v247 = vpop.permute.xlu0 %246
      %vm248 = vcmp.eq.s32.totalorder %v202, %v192
      %vm249 = vcmp.eq.s32.totalorder %v205, %v192
      %vm250 = vcmp.eq.s32.totalorder %v208, %v192
      %vm251 = vcmp.eq.s32.totalorder %v211, %v192
      %vm252 = vcmp.eq.s32.totalorder %v214, %v192
      %vm253 = vcmp.eq.s32.totalorder %v217, %v192
      %vm254 = vcmp.eq.s32.totalorder %v220, %v192
      %vm255 = vcmp.eq.s32.totalorder %v223, %v192
      %vm256 = vcmp.eq.s32.totalorder %v226, %v192
      %vm257 = vcmp.eq.s32.totalorder %v229, %v192
      %vm258 = vcmp.eq.s32.totalorder %v232, %v192
      %vm259 = vcmp.eq.s32.totalorder %v235, %v192
      %vm260 = vcmp.eq.s32.totalorder %v238, %v192
      %vm261 = vcmp.eq.s32.totalorder %v241, %v192
      %vm262 = vcmp.eq.s32.totalorder %v244, %v192
      %vm263 = vcmp.eq.s32.totalorder %v247, %v192
      %v264 = vsel %vm248, %v198, 0.0
      %v265 = vsel %vm249, %v198, 0.0
      %v266 = vsel %vm250, %v198, 0.0
      %v267 = vsel %vm251, %v198, 0.0
      %v268 = vsel %vm252, %v198, 0.0
      %v269 = vsel %vm253, %v198, 0.0
      %v270 = vsel %vm254, %v198, 0.0
      %v271 = vsel %vm255, %v198, 0.0
      %v272 = vsel %vm256, %v198, 0.0
      %v273 = vsel %vm257, %v198, 0.0
      %v274 = vsel %vm258, %v198, 0.0
      %v275 = vsel %vm259, %v198, 0.0
      %v276 = vsel %vm260, %v198, 0.0
      %v277 = vsel %vm261, %v198, 0.0
      %v278 = vsel %vm262, %v198, 0.0
      %v279 = vsel %vm263, %v198, 0.0
      %v280 = vadd.f32 %v264, 0.0
      %v281 = vadd.f32 %v265, 0.0
      %v282 = vadd.f32 %v266, 0.0
      %v283 = vadd.f32 %v267, 0.0
      %v284 = vadd.f32 %v268, 0.0
      %v285 = vadd.f32 %v269, 0.0
      %v286 = vadd.f32 %v270, 0.0
      %v287 = vadd.f32 %v271, 0.0
      %v288 = vadd.f32 %v272, 0.0
      %v289 = vadd.f32 %v273, 0.0
      %v290 = vadd.f32 %v274, 0.0
      %v291 = vadd.f32 %v275, 0.0
      %v292 = vadd.f32 %v276, 0.0
      %v293 = vadd.f32 %v277, 0.0
      %v294 = vadd.f32 %v278, 0.0
      %v295 = vadd.f32 %v279, 0.0
      %296 = vset.pattern.permute.xlu0 1
      %297 = vperm.xlu0 %296, %v175
      %v298 = vpop.permute.xlu0 %297
      %299 = vset.pattern.permute.xlu0 1
      %300 = vperm.xlu0 %299, %v176
      %v301 = vpop.permute.xlu0 %300
      %302 = vset.pattern.permute.xlu0 1
      %303 = vperm.xlu0 %302, %v177
      %v304 = vpop.permute.xlu0 %303
      %305 = vset.pattern.permute.xlu0 1
      %306 = vperm.xlu0 %305, %v178
      %v307 = vpop.permute.xlu0 %306
      %308 = vset.pattern.permute.xlu0 1
      %309 = vperm.xlu0 %308, %v179
      %v310 = vpop.permute.xlu0 %309
      %311 = vset.pattern.permute.xlu0 1
      %312 = vperm.xlu0 %311, %v180
      %v313 = vpop.permute.xlu0 %312
      %314 = vset.pattern.permute.xlu0 1
      %315 = vperm.xlu0 %314, %v181
      %v316 = vpop.permute.xlu0 %315
      %317 = vset.pattern.permute.xlu0 1
      %318 = vperm.xlu0 %317, %v182
      %v319 = vpop.permute.xlu0 %318
      %320 = vset.pattern.permute.xlu0 1
      %321 = vperm.xlu0 %320, %v183
      %v322 = vpop.permute.xlu0 %321
      %323 = vset.pattern.permute.xlu0 1
      %324 = vperm.xlu0 %323, %v184
      %v325 = vpop.permute.xlu0 %324
      %326 = vset.pattern.permute.xlu0 1
      %327 = vperm.xlu0 %326, %v185
      %v328 = vpop.permute.xlu0 %327
      %329 = vset.pattern.permute.xlu0 1
      %330 = vperm.xlu0 %329, %v186
      %v331 = vpop.permute.xlu0 %330
      %332 = vset.pattern.permute.xlu0 1
      %333 = vperm.xlu0 %332, %v187
      %v334 = vpop.permute.xlu0 %333
      %335 = vset.pattern.permute.xlu0 1
      %336 = vperm.xlu0 %335, %v188
      %v337 = vpop.permute.xlu0 %336
      %338 = vset.pattern.permute.xlu0 1
      %339 = vperm.xlu0 %338, %v189
      %v340 = vpop.permute.xlu0 %339
      %341 = vset.pattern.permute.xlu0 1
      %342 = vperm.xlu0 %341, %v190
      %v343 = vpop.permute.xlu0 %342
      %vm344 = vcmp.eq.s32.totalorder %v298, %v192
      %vm345 = vcmp.eq.s32.totalorder %v301, %v192
      %vm346 = vcmp.eq.s32.totalorder %v304, %v192
      %vm347 = vcmp.eq.s32.totalorder %v307, %v192
      %vm348 = vcmp.eq.s32.totalorder %v310, %v192
      %vm349 = vcmp.eq.s32.totalorder %v313, %v192
      %vm350 = vcmp.eq.s32.totalorder %v316, %v192
      %vm351 = vcmp.eq.s32.totalorder %v319, %v192
      %vm352 = vcmp.eq.s32.totalorder %v322, %v192
      %vm353 = vcmp.eq.s32.totalorder %v325, %v192
      %vm354 = vcmp.eq.s32.totalorder %v328, %v192
      %vm355 = vcmp.eq.s32.totalorder %v331, %v192
      %vm356 = vcmp.eq.s32.totalorder %v334, %v192
      %vm357 = vcmp.eq.s32.totalorder %v337, %v192
      %vm358 = vcmp.eq.s32.totalorder %v340, %v192
      %vm359 = vcmp.eq.s32.totalorder %v343, %v192
      %v360 = vsel %vm344, %v198, 0.0
      %v361 = vsel %vm345, %v198, 0.0
      %v362 = vsel %vm346, %v198, 0.0
      %v363 = vsel %vm347, %v198, 0.0
      %v364 = vsel %vm348, %v198, 0.0
      %v365 = vsel %vm349, %v198, 0.0
      %v366 = vsel %vm350, %v198, 0.0
      %v367 = vsel %vm351, %v198, 0.0
      %v368 = vsel %vm352, %v198, 0.0
      %v369 = vsel %vm353, %v198, 0.0
      %v370 = vsel %vm354, %v198, 0.0
      %v371 = vsel %vm355, %v198, 0.0
      %v372 = vsel %vm356, %v198, 0.0
      %v373 = vsel %vm357, %v198, 0.0
      %v374 = vsel %vm358, %v198, 0.0
      %v375 = vsel %vm359, %v198, 0.0
      %v376 = vadd.f32 %v280, %v360
      %v377 = vadd.f32 %v281, %v361
      %v378 = vadd.f32 %v282, %v362
      %v379 = vadd.f32 %v283, %v363
      %v380 = vadd.f32 %v284, %v364
      %v381 = vadd.f32 %v285, %v365
      %v382 = vadd.f32 %v286, %v366
      %v383 = vadd.f32 %v287, %v367
      %v384 = vadd.f32 %v288, %v368
      %v385 = vadd.f32 %v289, %v369
      %v386 = vadd.f32 %v290, %v370
      %v387 = vadd.f32 %v291, %v371
      %v388 = vadd.f32 %v292, %v372
      %v389 = vadd.f32 %v293, %v373
      %v390 = vadd.f32 %v294, %v374
      %v391 = vadd.f32 %v295, %v375
      %392 = vset.pattern.permute.xlu0 2
      %393 = vperm.xlu0 %392, %v175
      %v394 = vpop.permute.xlu0 %393
      %395 = vset.pattern.permute.xlu0 2
      %396 = vperm.xlu0 %395, %v176
      %v397 = vpop.permute.xlu0 %396
      %398 = vset.pattern.permute.xlu0 2
      %399 = vperm.xlu0 %398, %v177
      %v400 = vpop.permute.xlu0 %399
      %401 = vset.pattern.permute.xlu0 2
      %402 = vperm.xlu0 %401, %v178
      %v403 = vpop.permute.xlu0 %402
      %404 = vset.pattern.permute.xlu0 2
      %405 = vperm.xlu0 %404, %v179
      %v406 = vpop.permute.xlu0 %405
      %407 = vset.pattern.permute.xlu0 2
      %408 = vperm.xlu0 %407, %v180
      %v409 = vpop.permute.xlu0 %408
      %410 = vset.pattern.permute.xlu0 2
      %411 = vperm.xlu0 %410, %v181
      %v412 = vpop.permute.xlu0 %411
      %413 = vset.pattern.permute.xlu0 2
      %414 = vperm.xlu0 %413, %v182
      %v415 = vpop.permute.xlu0 %414
      %416 = vset.pattern.permute.xlu0 2
      %417 = vperm.xlu0 %416, %v183
      %v418 = vpop.permute.xlu0 %417
      %419 = vset.pattern.permute.xlu0 2
      %420 = vperm.xlu0 %419, %v184
      %v421 = vpop.permute.xlu0 %420
      %422 = vset.pattern.permute.xlu0 2
      %423 = vperm.xlu0 %422, %v185
      %v424 = vpop.permute.xlu0 %423
      %425 = vset.pattern.permute.xlu0 2
      %426 = vperm.xlu0 %425, %v186
      %v427 = vpop.permute.xlu0 %426
      %428 = vset.pattern.permute.xlu0 2
      %429 = vperm.xlu0 %428, %v187
      %v430 = vpop.permute.xlu0 %429
      %431 = vset.pattern.permute.xlu0 2
      %432 = vperm.xlu0 %431, %v188
      %v433 = vpop.permute.xlu0 %432
      %434 = vset.pattern.permute.xlu0 2
      %435 = vperm.xlu0 %434, %v189
      %v436 = vpop.permute.xlu0 %435
      %437 = vset.pattern.permute.xlu0 2
      %438 = vperm.xlu0 %437, %v190
      %v439 = vpop.permute.xlu0 %438
      %vm440 = vcmp.eq.s32.totalorder %v394, %v192
      %vm441 = vcmp.eq.s32.totalorder %v397, %v192
      %vm442 = vcmp.eq.s32.totalorder %v400, %v192
      %vm443 = vcmp.eq.s32.totalorder %v403, %v192
      %vm444 = vcmp.eq.s32.totalorder %v406, %v192
      %vm445 = vcmp.eq.s32.totalorder %v409, %v192
      %vm446 = vcmp.eq.s32.totalorder %v412, %v192
      %vm447 = vcmp.eq.s32.totalorder %v415, %v192
      %vm448 = vcmp.eq.s32.totalorder %v418, %v192
      %vm449 = vcmp.eq.s32.totalorder %v421, %v192
      %vm450 = vcmp.eq.s32.totalorder %v424, %v192
      %vm451 = vcmp.eq.s32.totalorder %v427, %v192
      %vm452 = vcmp.eq.s32.totalorder %v430, %v192
      %vm453 = vcmp.eq.s32.totalorder %v433, %v192
      %vm454 = vcmp.eq.s32.totalorder %v436, %v192
      %vm455 = vcmp.eq.s32.totalorder %v439, %v192
      %v456 = vsel %vm440, %v198, 0.0
      %v457 = vsel %vm441, %v198, 0.0
      %v458 = vsel %vm442, %v198, 0.0
      %v459 = vsel %vm443, %v198, 0.0
      %v460 = vsel %vm444, %v198, 0.0
      %v461 = vsel %vm445, %v198, 0.0
      %v462 = vsel %vm446, %v198, 0.0
      %v463 = vsel %vm447, %v198, 0.0
      %v464 = vsel %vm448, %v198, 0.0
      %v465 = vsel %vm449, %v198, 0.0
      %v466 = vsel %vm450, %v198, 0.0
      %v467 = vsel %vm451, %v198, 0.0
      %v468 = vsel %vm452, %v198, 0.0
      %v469 = vsel %vm453, %v198, 0.0
      %v470 = vsel %vm454, %v198, 0.0
      %v471 = vsel %vm455, %v198, 0.0
      %v472 = vadd.f32 %v376, %v456
      %v473 = vadd.f32 %v377, %v457
      %v474 = vadd.f32 %v378, %v458
      %v475 = vadd.f32 %v379, %v459
      %v476 = vadd.f32 %v380, %v460
      %v477 = vadd.f32 %v381, %v461
      %v478 = vadd.f32 %v382, %v462
      %v479 = vadd.f32 %v383, %v463
      %v480 = vadd.f32 %v384, %v464
      %v481 = vadd.f32 %v385, %v465
      %v482 = vadd.f32 %v386, %v466
      %v483 = vadd.f32 %v387, %v467
      %v484 = vadd.f32 %v388, %v468
      %v485 = vadd.f32 %v389, %v469
      %v486 = vadd.f32 %v390, %v470
      %v487 = vadd.f32 %v391, %v471
      %488 = vset.pattern.permute.xlu0 3
      %489 = vperm.xlu0 %488, %v175
      %v490 = vpop.permute.xlu0 %489
      %491 = vset.pattern.permute.xlu0 3
      %492 = vperm.xlu0 %491, %v176
      %v493 = vpop.permute.xlu0 %492
      %494 = vset.pattern.permute.xlu0 3
      %495 = vperm.xlu0 %494, %v177
      %v496 = vpop.permute.xlu0 %495
      %497 = vset.pattern.permute.xlu0 3
      %498 = vperm.xlu0 %497, %v178
      %v499 = vpop.permute.xlu0 %498
      %500 = vset.pattern.permute.xlu0 3
      %501 = vperm.xlu0 %500, %v179
      %v502 = vpop.permute.xlu0 %501
      %503 = vset.pattern.permute.xlu0 3
      %504 = vperm.xlu0 %503, %v180
      %v505 = vpop.permute.xlu0 %504
      %506 = vset.pattern.permute.xlu0 3
      %507 = vperm.xlu0 %506, %v181
      %v508 = vpop.permute.xlu0 %507
      %509 = vset.pattern.permute.xlu0 3
      %510 = vperm.xlu0 %509, %v182
      %v511 = vpop.permute.xlu0 %510
      %512 = vset.pattern.permute.xlu0 3
      %513 = vperm.xlu0 %512, %v183
      %v514 = vpop.permute.xlu0 %513
      %515 = vset.pattern.permute.xlu0 3
      %516 = vperm.xlu0 %515, %v184
      %v517 = vpop.permute.xlu0 %516
      %518 = vset.pattern.permute.xlu0 3
      %519 = vperm.xlu0 %518, %v185
      %v520 = vpop.permute.xlu0 %519
      %521 = vset.pattern.permute.xlu0 3
      %522 = vperm.xlu0 %521, %v186
      %v523 = vpop.permute.xlu0 %522
      %524 = vset.pattern.permute.xlu0 3
      %525 = vperm.xlu0 %524, %v187
      %v526 = vpop.permute.xlu0 %525
      %527 = vset.pattern.permute.xlu0 3
      %528 = vperm.xlu0 %527, %v188
      %v529 = vpop.permute.xlu0 %528
      %530 = vset.pattern.permute.xlu0 3
      %531 = vperm.xlu0 %530, %v189
      %v532 = vpop.permute.xlu0 %531
      %533 = vset.pattern.permute.xlu0 3
      %534 = vperm.xlu0 %533, %v190
      %v535 = vpop.permute.xlu0 %534
      %vm536 = vcmp.eq.s32.totalorder %v490, %v192
      %vm537 = vcmp.eq.s32.totalorder %v493, %v192
      %vm538 = vcmp.eq.s32.totalorder %v496, %v192
      %vm539 = vcmp.eq.s32.totalorder %v499, %v192
      %vm540 = vcmp.eq.s32.totalorder %v502, %v192
      %vm541 = vcmp.eq.s32.totalorder %v505, %v192
      %vm542 = vcmp.eq.s32.totalorder %v508, %v192
      %vm543 = vcmp.eq.s32.totalorder %v511, %v192
      %vm544 = vcmp.eq.s32.totalorder %v514, %v192
      %vm545 = vcmp.eq.s32.totalorder %v517, %v192
      %vm546 = vcmp.eq.s32.totalorder %v520, %v192
      %vm547 = vcmp.eq.s32.totalorder %v523, %v192
      %vm548 = vcmp.eq.s32.totalorder %v526, %v192
      %vm549 = vcmp.eq.s32.totalorder %v529, %v192
      %vm550 = vcmp.eq.s32.totalorder %v532, %v192
      %vm551 = vcmp.eq.s32.totalorder %v535, %v192
      %v552 = vsel %vm536, %v198, 0.0
      %v553 = vsel %vm537, %v198, 0.0
      %v554 = vsel %vm538, %v198, 0.0
      %v555 = vsel %vm539, %v198, 0.0
      %v556 = vsel %vm540, %v198, 0.0
      %v557 = vsel %vm541, %v198, 0.0
      %v558 = vsel %vm542, %v198, 0.0
      %v559 = vsel %vm543, %v198, 0.0
      %v560 = vsel %vm544, %v198, 0.0
      %v561 = vsel %vm545, %v198, 0.0
      %v562 = vsel %vm546, %v198, 0.0
      %v563 = vsel %vm547, %v198, 0.0
      %v564 = vsel %vm548, %v198, 0.0
      %v565 = vsel %vm549, %v198, 0.0
      %v566 = vsel %vm550, %v198, 0.0
      %v567 = vsel %vm551, %v198, 0.0
      %v568 = vadd.f32 %v472, %v552
      %v569 = vadd.f32 %v473, %v553
      %v570 = vadd.f32 %v474, %v554
      %v571 = vadd.f32 %v475, %v555
      %v572 = vadd.f32 %v476, %v556
      %v573 = vadd.f32 %v477, %v557
      %v574 = vadd.f32 %v478, %v558
      %v575 = vadd.f32 %v479, %v559
      %v576 = vadd.f32 %v480, %v560
      %v577 = vadd.f32 %v481, %v561
      %v578 = vadd.f32 %v482, %v562
      %v579 = vadd.f32 %v483, %v563
      %v580 = vadd.f32 %v484, %v564
      %v581 = vadd.f32 %v485, %v565
      %v582 = vadd.f32 %v486, %v566
      %v583 = vadd.f32 %v487, %v567
      %584 = vset.pattern.permute.xlu0 4
      %585 = vperm.xlu0 %584, %v175
      %v586 = vpop.permute.xlu0 %585
      %587 = vset.pattern.permute.xlu0 4
      %588 = vperm.xlu0 %587, %v176
      %v589 = vpop.permute.xlu0 %588
      %590 = vset.pattern.permute.xlu0 4
      %591 = vperm.xlu0 %590, %v177
      %v592 = vpop.permute.xlu0 %591
      %593 = vset.pattern.permute.xlu0 4
      %594 = vperm.xlu0 %593, %v178
      %v595 = vpop.permute.xlu0 %594
      %596 = vset.pattern.permute.xlu0 4
      %597 = vperm.xlu0 %596, %v179
      %v598 = vpop.permute.xlu0 %597
      %599 = vset.pattern.permute.xlu0 4
      %600 = vperm.xlu0 %599, %v180
      %v601 = vpop.permute.xlu0 %600
      %602 = vset.pattern.permute.xlu0 4
      %603 = vperm.xlu0 %602, %v181
      %v604 = vpop.permute.xlu0 %603
      %605 = vset.pattern.permute.xlu0 4
      %606 = vperm.xlu0 %605, %v182
      %v607 = vpop.permute.xlu0 %606
      %608 = vset.pattern.permute.xlu0 4
      %609 = vperm.xlu0 %608, %v183
      %v610 = vpop.permute.xlu0 %609
      %611 = vset.pattern.permute.xlu0 4
      %612 = vperm.xlu0 %611, %v184
      %v613 = vpop.permute.xlu0 %612
      %614 = vset.pattern.permute.xlu0 4
      %615 = vperm.xlu0 %614, %v185
      %v616 = vpop.permute.xlu0 %615
      %617 = vset.pattern.permute.xlu0 4
      %618 = vperm.xlu0 %617, %v186
      %v619 = vpop.permute.xlu0 %618
      %620 = vset.pattern.permute.xlu0 4
      %621 = vperm.xlu0 %620, %v187
      %v622 = vpop.permute.xlu0 %621
      %623 = vset.pattern.permute.xlu0 4
      %624 = vperm.xlu0 %623, %v188
      %v625 = vpop.permute.xlu0 %624
      %626 = vset.pattern.permute.xlu0 4
      %627 = vperm.xlu0 %626, %v189
      %v628 = vpop.permute.xlu0 %627
      %629 = vset.pattern.permute.xlu0 4
      %630 = vperm.xlu0 %629, %v190
      %v631 = vpop.permute.xlu0 %630
      %vm632 = vcmp.eq.s32.totalorder %v586, %v192
      %vm633 = vcmp.eq.s32.totalorder %v589, %v192
      %vm634 = vcmp.eq.s32.totalorder %v592, %v192
      %vm635 = vcmp.eq.s32.totalorder %v595, %v192
      %vm636 = vcmp.eq.s32.totalorder %v598, %v192
      %vm637 = vcmp.eq.s32.totalorder %v601, %v192
      %vm638 = vcmp.eq.s32.totalorder %v604, %v192
      %vm639 = vcmp.eq.s32.totalorder %v607, %v192
      %vm640 = vcmp.eq.s32.totalorder %v610, %v192
      %vm641 = vcmp.eq.s32.totalorder %v613, %v192
      %vm642 = vcmp.eq.s32.totalorder %v616, %v192
      %vm643 = vcmp.eq.s32.totalorder %v619, %v192
      %vm644 = vcmp.eq.s32.totalorder %v622, %v192
      %vm645 = vcmp.eq.s32.totalorder %v625, %v192
      %vm646 = vcmp.eq.s32.totalorder %v628, %v192
      %vm647 = vcmp.eq.s32.totalorder %v631, %v192
      %v648 = vsel %vm632, %v198, 0.0
      %v649 = vsel %vm633, %v198, 0.0
      %v650 = vsel %vm634, %v198, 0.0
      %v651 = vsel %vm635, %v198, 0.0
      %v652 = vsel %vm636, %v198, 0.0
      %v653 = vsel %vm637, %v198, 0.0
      %v654 = vsel %vm638, %v198, 0.0
      %v655 = vsel %vm639, %v198, 0.0
      %v656 = vsel %vm640, %v198, 0.0
      %v657 = vsel %vm641, %v198, 0.0
      %v658 = vsel %vm642, %v198, 0.0
      %v659 = vsel %vm643, %v198, 0.0
      %v660 = vsel %vm644, %v198, 0.0
      %v661 = vsel %vm645, %v198, 0.0
      %v662 = vsel %vm646, %v198, 0.0
      %v663 = vsel %vm647, %v198, 0.0
      %v664 = vadd.f32 %v568, %v648
      %v665 = vadd.f32 %v569, %v649
      %v666 = vadd.f32 %v570, %v650
      %v667 = vadd.f32 %v571, %v651
      %v668 = vadd.f32 %v572, %v652
      %v669 = vadd.f32 %v573, %v653
      %v670 = vadd.f32 %v574, %v654
      %v671 = vadd.f32 %v575, %v655
      %v672 = vadd.f32 %v576, %v656
      %v673 = vadd.f32 %v577, %v657
      %v674 = vadd.f32 %v578, %v658
      %v675 = vadd.f32 %v579, %v659
      %v676 = vadd.f32 %v580, %v660
      %v677 = vadd.f32 %v581, %v661
      %v678 = vadd.f32 %v582, %v662
      %v679 = vadd.f32 %v583, %v663
      %680 = vset.pattern.permute.xlu0 5
      %681 = vperm.xlu0 %680, %v175
      %v682 = vpop.permute.xlu0 %681
      %683 = vset.pattern.permute.xlu0 5
      %684 = vperm.xlu0 %683, %v176
      %v685 = vpop.permute.xlu0 %684
      %686 = vset.pattern.permute.xlu0 5
      %687 = vperm.xlu0 %686, %v177
      %v688 = vpop.permute.xlu0 %687
      %689 = vset.pattern.permute.xlu0 5
      %690 = vperm.xlu0 %689, %v178
      %v691 = vpop.permute.xlu0 %690
      %692 = vset.pattern.permute.xlu0 5
      %693 = vperm.xlu0 %692, %v179
      %v694 = vpop.permute.xlu0 %693
      %695 = vset.pattern.permute.xlu0 5
      %696 = vperm.xlu0 %695, %v180
      %v697 = vpop.permute.xlu0 %696
      %698 = vset.pattern.permute.xlu0 5
      %699 = vperm.xlu0 %698, %v181
      %v700 = vpop.permute.xlu0 %699
      %701 = vset.pattern.permute.xlu0 5
      %702 = vperm.xlu0 %701, %v182
      %v703 = vpop.permute.xlu0 %702
      %704 = vset.pattern.permute.xlu0 5
      %705 = vperm.xlu0 %704, %v183
      %v706 = vpop.permute.xlu0 %705
      %707 = vset.pattern.permute.xlu0 5
      %708 = vperm.xlu0 %707, %v184
      %v709 = vpop.permute.xlu0 %708
      %710 = vset.pattern.permute.xlu0 5
      %711 = vperm.xlu0 %710, %v185
      %v712 = vpop.permute.xlu0 %711
      %713 = vset.pattern.permute.xlu0 5
      %714 = vperm.xlu0 %713, %v186
      %v715 = vpop.permute.xlu0 %714
      %716 = vset.pattern.permute.xlu0 5
      %717 = vperm.xlu0 %716, %v187
      %v718 = vpop.permute.xlu0 %717
      %719 = vset.pattern.permute.xlu0 5
      %720 = vperm.xlu0 %719, %v188
      %v721 = vpop.permute.xlu0 %720
      %722 = vset.pattern.permute.xlu0 5
      %723 = vperm.xlu0 %722, %v189
      %v724 = vpop.permute.xlu0 %723
      %725 = vset.pattern.permute.xlu0 5
      %726 = vperm.xlu0 %725, %v190
      %v727 = vpop.permute.xlu0 %726
      %vm728 = vcmp.eq.s32.totalorder %v682, %v192
      %vm729 = vcmp.eq.s32.totalorder %v685, %v192
      %vm730 = vcmp.eq.s32.totalorder %v688, %v192
      %vm731 = vcmp.eq.s32.totalorder %v691, %v192
      %vm732 = vcmp.eq.s32.totalorder %v694, %v192
      %vm733 = vcmp.eq.s32.totalorder %v697, %v192
      %vm734 = vcmp.eq.s32.totalorder %v700, %v192
      %vm735 = vcmp.eq.s32.totalorder %v703, %v192
      %vm736 = vcmp.eq.s32.totalorder %v706, %v192
      %vm737 = vcmp.eq.s32.totalorder %v709, %v192
      %vm738 = vcmp.eq.s32.totalorder %v712, %v192
      %vm739 = vcmp.eq.s32.totalorder %v715, %v192
      %vm740 = vcmp.eq.s32.totalorder %v718, %v192
      %vm741 = vcmp.eq.s32.totalorder %v721, %v192
      %vm742 = vcmp.eq.s32.totalorder %v724, %v192
      %vm743 = vcmp.eq.s32.totalorder %v727, %v192
      %v744 = vsel %vm728, %v198, 0.0
      %v745 = vsel %vm729, %v198, 0.0
      %v746 = vsel %vm730, %v198, 0.0
      %v747 = vsel %vm731, %v198, 0.0
      %v748 = vsel %vm732, %v198, 0.0
      %v749 = vsel %vm733, %v198, 0.0
      %v750 = vsel %vm734, %v198, 0.0
      %v751 = vsel %vm735, %v198, 0.0
      %v752 = vsel %vm736, %v198, 0.0
      %v753 = vsel %vm737, %v198, 0.0
      %v754 = vsel %vm738, %v198, 0.0
      %v755 = vsel %vm739, %v198, 0.0
      %v756 = vsel %vm740, %v198, 0.0
      %v757 = vsel %vm741, %v198, 0.0
      %v758 = vsel %vm742, %v198, 0.0
      %v759 = vsel %vm743, %v198, 0.0
      %v760 = vadd.f32 %v664, %v744
      %v761 = vadd.f32 %v665, %v745
      %v762 = vadd.f32 %v666, %v746
      %v763 = vadd.f32 %v667, %v747
      %v764 = vadd.f32 %v668, %v748
      %v765 = vadd.f32 %v669, %v749
      %v766 = vadd.f32 %v670, %v750
      %v767 = vadd.f32 %v671, %v751
      %v768 = vadd.f32 %v672, %v752
      %v769 = vadd.f32 %v673, %v753
      %v770 = vadd.f32 %v674, %v754
      %v771 = vadd.f32 %v675, %v755
      %v772 = vadd.f32 %v676, %v756
      %v773 = vadd.f32 %v677, %v757
      %v774 = vadd.f32 %v678, %v758
      %v775 = vadd.f32 %v679, %v759
      %776 = vset.pattern.permute.xlu0 6
      %777 = vperm.xlu0 %776, %v175
      %v778 = vpop.permute.xlu0 %777
      %779 = vset.pattern.permute.xlu0 6
      %780 = vperm.xlu0 %779, %v176
      %v781 = vpop.permute.xlu0 %780
      %782 = vset.pattern.permute.xlu0 6
      %783 = vperm.xlu0 %782, %v177
      %v784 = vpop.permute.xlu0 %783
      %785 = vset.pattern.permute.xlu0 6
      %786 = vperm.xlu0 %785, %v178
      %v787 = vpop.permute.xlu0 %786
      %788 = vset.pattern.permute.xlu0 6
      %789 = vperm.xlu0 %788, %v179
      %v790 = vpop.permute.xlu0 %789
      %791 = vset.pattern.permute.xlu0 6
      %792 = vperm.xlu0 %791, %v180
      %v793 = vpop.permute.xlu0 %792
      %794 = vset.pattern.permute.xlu0 6
      %795 = vperm.xlu0 %794, %v181
      %v796 = vpop.permute.xlu0 %795
      %797 = vset.pattern.permute.xlu0 6
      %798 = vperm.xlu0 %797, %v182
      %v799 = vpop.permute.xlu0 %798
      %800 = vset.pattern.permute.xlu0 6
      %801 = vperm.xlu0 %800, %v183
      %v802 = vpop.permute.xlu0 %801
      %803 = vset.pattern.permute.xlu0 6
      %804 = vperm.xlu0 %803, %v184
      %v805 = vpop.permute.xlu0 %804
      %806 = vset.pattern.permute.xlu0 6
      %807 = vperm.xlu0 %806, %v185
      %v808 = vpop.permute.xlu0 %807
      %809 = vset.pattern.permute.xlu0 6
      %810 = vperm.xlu0 %809, %v186
      %v811 = vpop.permute.xlu0 %810
      %812 = vset.pattern.permute.xlu0 6
      %813 = vperm.xlu0 %812, %v187
      %v814 = vpop.permute.xlu0 %813
      %815 = vset.pattern.permute.xlu0 6
      %816 = vperm.xlu0 %815, %v188
      %v817 = vpop.permute.xlu0 %816
      %818 = vset.pattern.permute.xlu0 6
      %819 = vperm.xlu0 %818, %v189
      %v820 = vpop.permute.xlu0 %819
      %821 = vset.pattern.permute.xlu0 6
      %822 = vperm.xlu0 %821, %v190
      %v823 = vpop.permute.xlu0 %822
      %vm824 = vcmp.eq.s32.totalorder %v778, %v192
      %vm825 = vcmp.eq.s32.totalorder %v781, %v192
      %vm826 = vcmp.eq.s32.totalorder %v784, %v192
      %vm827 = vcmp.eq.s32.totalorder %v787, %v192
      %vm828 = vcmp.eq.s32.totalorder %v790, %v192
      %vm829 = vcmp.eq.s32.totalorder %v793, %v192
      %vm830 = vcmp.eq.s32.totalorder %v796, %v192
      %vm831 = vcmp.eq.s32.totalorder %v799, %v192
      %vm832 = vcmp.eq.s32.totalorder %v802, %v192
      %vm833 = vcmp.eq.s32.totalorder %v805, %v192
      %vm834 = vcmp.eq.s32.totalorder %v808, %v192
      %vm835 = vcmp.eq.s32.totalorder %v811, %v192
      %vm836 = vcmp.eq.s32.totalorder %v814, %v192
      %vm837 = vcmp.eq.s32.totalorder %v817, %v192
      %vm838 = vcmp.eq.s32.totalorder %v820, %v192
      %vm839 = vcmp.eq.s32.totalorder %v823, %v192
      %v840 = vsel %vm824, %v198, 0.0
      %v841 = vsel %vm825, %v198, 0.0
      %v842 = vsel %vm826, %v198, 0.0
      %v843 = vsel %vm827, %v198, 0.0
      %v844 = vsel %vm828, %v198, 0.0
      %v845 = vsel %vm829, %v198, 0.0
      %v846 = vsel %vm830, %v198, 0.0
      %v847 = vsel %vm831, %v198, 0.0
      %v848 = vsel %vm832, %v198, 0.0
      %v849 = vsel %vm833, %v198, 0.0
      %v850 = vsel %vm834, %v198, 0.0
      %v851 = vsel %vm835, %v198, 0.0
      %v852 = vsel %vm836, %v198, 0.0
      %v853 = vsel %vm837, %v198, 0.0
      %v854 = vsel %vm838, %v198, 0.0
      %v855 = vsel %vm839, %v198, 0.0
      %v856 = vadd.f32 %v760, %v840
      %v857 = vadd.f32 %v761, %v841
      %v858 = vadd.f32 %v762, %v842
      %v859 = vadd.f32 %v763, %v843
      %v860 = vadd.f32 %v764, %v844
      %v861 = vadd.f32 %v765, %v845
      %v862 = vadd.f32 %v766, %v846
      %v863 = vadd.f32 %v767, %v847
      %v864 = vadd.f32 %v768, %v848
      %v865 = vadd.f32 %v769, %v849
      %v866 = vadd.f32 %v770, %v850
      %v867 = vadd.f32 %v771, %v851
      %v868 = vadd.f32 %v772, %v852
      %v869 = vadd.f32 %v773, %v853
      %v870 = vadd.f32 %v774, %v854
      %v871 = vadd.f32 %v775, %v855
      %872 = vset.pattern.permute.xlu0 7
      %873 = vperm.xlu0 %872, %v175
      %v874 = vpop.permute.xlu0 %873
      %875 = vset.pattern.permute.xlu0 7
      %876 = vperm.xlu0 %875, %v176
      %v877 = vpop.permute.xlu0 %876
      %878 = vset.pattern.permute.xlu0 7
      %879 = vperm.xlu0 %878, %v177
      %v880 = vpop.permute.xlu0 %879
      %881 = vset.pattern.permute.xlu0 7
      %882 = vperm.xlu0 %881, %v178
      %v883 = vpop.permute.xlu0 %882
      %884 = vset.pattern.permute.xlu0 7
      %885 = vperm.xlu0 %884, %v179
      %v886 = vpop.permute.xlu0 %885
      %887 = vset.pattern.permute.xlu0 7
      %888 = vperm.xlu0 %887, %v180
      %v889 = vpop.permute.xlu0 %888
      %890 = vset.pattern.permute.xlu0 7
      %891 = vperm.xlu0 %890, %v181
      %v892 = vpop.permute.xlu0 %891
      %893 = vset.pattern.permute.xlu0 7
      %894 = vperm.xlu0 %893, %v182
      %v895 = vpop.permute.xlu0 %894
      %896 = vset.pattern.permute.xlu0 7
      %897 = vperm.xlu0 %896, %v183
      %v898 = vpop.permute.xlu0 %897
      %899 = vset.pattern.permute.xlu0 7
      %900 = vperm.xlu0 %899, %v184
      %v901 = vpop.permute.xlu0 %900
      %902 = vset.pattern.permute.xlu0 7
      %903 = vperm.xlu0 %902, %v185
      %v904 = vpop.permute.xlu0 %903
      %905 = vset.pattern.permute.xlu0 7
      %906 = vperm.xlu0 %905, %v186
      %v907 = vpop.permute.xlu0 %906
      %908 = vset.pattern.permute.xlu0 7
      %909 = vperm.xlu0 %908, %v187
      %v910 = vpop.permute.xlu0 %909
      %911 = vset.pattern.permute.xlu0 7
      %912 = vperm.xlu0 %911, %v188
      %v913 = vpop.permute.xlu0 %912
      %914 = vset.pattern.permute.xlu0 7
      %915 = vperm.xlu0 %914, %v189
      %v916 = vpop.permute.xlu0 %915
      %917 = vset.pattern.permute.xlu0 7
      %918 = vperm.xlu0 %917, %v190
      %v919 = vpop.permute.xlu0 %918
      %vm920 = vcmp.eq.s32.totalorder %v874, %v192
      %vm921 = vcmp.eq.s32.totalorder %v877, %v192
      %vm922 = vcmp.eq.s32.totalorder %v880, %v192
      %vm923 = vcmp.eq.s32.totalorder %v883, %v192
      %vm924 = vcmp.eq.s32.totalorder %v886, %v192
      %vm925 = vcmp.eq.s32.totalorder %v889, %v192
      %vm926 = vcmp.eq.s32.totalorder %v892, %v192
      %vm927 = vcmp.eq.s32.totalorder %v895, %v192
      %vm928 = vcmp.eq.s32.totalorder %v898, %v192
      %vm929 = vcmp.eq.s32.totalorder %v901, %v192
      %vm930 = vcmp.eq.s32.totalorder %v904, %v192
      %vm931 = vcmp.eq.s32.totalorder %v907, %v192
      %vm932 = vcmp.eq.s32.totalorder %v910, %v192
      %vm933 = vcmp.eq.s32.totalorder %v913, %v192
      %vm934 = vcmp.eq.s32.totalorder %v916, %v192
      %vm935 = vcmp.eq.s32.totalorder %v919, %v192
      %v936 = vsel %vm920, %v198, 0.0
      %v937 = vsel %vm921, %v198, 0.0
      %v938 = vsel %vm922, %v198, 0.0
      %v939 = vsel %vm923, %v198, 0.0
      %v940 = vsel %vm924, %v198, 0.0
      %v941 = vsel %vm925, %v198, 0.0
      %v942 = vsel %vm926, %v198, 0.0
      %v943 = vsel %vm927, %v198, 0.0
      %v944 = vsel %vm928, %v198, 0.0
      %v945 = vsel %vm929, %v198, 0.0
      %v946 = vsel %vm930, %v198, 0.0
      %v947 = vsel %vm931, %v198, 0.0
      %v948 = vsel %vm932, %v198, 0.0
      %v949 = vsel %vm933, %v198, 0.0
      %v950 = vsel %vm934, %v198, 0.0
      %v951 = vsel %vm935, %v198, 0.0
      %v952 = vadd.f32 %v856, %v936
      %v953 = vadd.f32 %v857, %v937
      %v954 = vadd.f32 %v858, %v938
      %v955 = vadd.f32 %v859, %v939
      %v956 = vadd.f32 %v860, %v940
      %v957 = vadd.f32 %v861, %v941
      %v958 = vadd.f32 %v862, %v942
      %v959 = vadd.f32 %v863, %v943
      %v960 = vadd.f32 %v864, %v944
      %v961 = vadd.f32 %v865, %v945
      %v962 = vadd.f32 %v866, %v946
      %v963 = vadd.f32 %v867, %v947
      %v964 = vadd.f32 %v868, %v948
      %v965 = vadd.f32 %v869, %v949
      %v966 = vadd.f32 %v870, %v950
      %v967 = vadd.f32 %v871, %v951
      %vm968 = vcmask 523264
      %v969 = vsel %vm968, %v952, 0.0
      %970 = vadd.xlane.f32.xlu0 %v969
      %v971 = vpop.xlane.xlu0 %970
      %v972 = vsel %vm968, %v953, 0.0
      %973 = vadd.xlane.f32.xlu0 %v972
      %v974 = vpop.xlane.xlu0 %973
      %v975 = vsel %vm968, %v954, 0.0
      %976 = vadd.xlane.f32.xlu0 %v975
      %v977 = vpop.xlane.xlu0 %976
      %v978 = vsel %vm968, %v955, 0.0
      %979 = vadd.xlane.f32.xlu0 %v978
      %v980 = vpop.xlane.xlu0 %979
      %v981 = vsel %vm968, %v956, 0.0
      %982 = vadd.xlane.f32.xlu0 %v981
      %v983 = vpop.xlane.xlu0 %982
      %v984 = vsel %vm968, %v957, 0.0
      %985 = vadd.xlane.f32.xlu0 %v984
      %v986 = vpop.xlane.xlu0 %985
      %v987 = vsel %vm968, %v958, 0.0
      %988 = vadd.xlane.f32.xlu0 %v987
      %v989 = vpop.xlane.xlu0 %988
      %v990 = vsel %vm968, %v959, 0.0
      %991 = vadd.xlane.f32.xlu0 %v990
      %v992 = vpop.xlane.xlu0 %991
      %v993 = vsel %vm968, %v960, 0.0
      %994 = vadd.xlane.f32.xlu0 %v993
      %v995 = vpop.xlane.xlu0 %994
      %v996 = vsel %vm968, %v961, 0.0
      %997 = vadd.xlane.f32.xlu0 %v996
      %v998 = vpop.xlane.xlu0 %997
      %v999 = vsel %vm968, %v962, 0.0
      %1000 = vadd.xlane.f32.xlu0 %v999
      %v1001 = vpop.xlane.xlu0 %1000
      %v1002 = vsel %vm968, %v963, 0.0
      %1003 = vadd.xlane.f32.xlu0 %v1002
      %v1004 = vpop.xlane.xlu0 %1003
      %v1005 = vsel %vm968, %v964, 0.0
      %1006 = vadd.xlane.f32.xlu0 %v1005
      %v1007 = vpop.xlane.xlu0 %1006
      %v1008 = vsel %vm968, %v965, 0.0
      %1009 = vadd.xlane.f32.xlu0 %v1008
      %v1010 = vpop.xlane.xlu0 %1009
      %v1011 = vsel %vm968, %v966, 0.0
      %1012 = vadd.xlane.f32.xlu0 %v1011
      %v1013 = vpop.xlane.xlu0 %1012
      %v1014 = vsel %vm968, %v967, 0.0
      %1015 = vadd.xlane.f32.xlu0 %v1014
      %v1016 = vpop.xlane.xlu0 %1015
      %v1017 = vpack.c.bf16 %v953, %v952
      %v1018 = vpack.c.bf16 %v955, %v954
      %v1019 = vpack.c.bf16 %v957, %v956
      %v1020 = vpack.c.bf16 %v959, %v958
      %v1021 = vpack.c.bf16 %v961, %v960
      %v1022 = vpack.c.bf16 %v963, %v962
      %v1023 = vpack.c.bf16 %v965, %v964
      %v1024 = vpack.c.bf16 %v967, %v966
      %v1025 = vld [vmem:[%s2] sm:$0xf]
      %v1026 = vld [vmem:[%s2 + $0x4] sm:$0xf]
      %v1027 = vld [vmem:[%s2 + $0x8] sm:$0xf]
      %v1028 = vld [vmem:[%s2 + $0xc] sm:$0xf]
      %v1029 = vld [vmem:[%s2 + $0x10] sm:$0xf]
      %v1030 = vld [vmem:[%s2 + $0x14] sm:$0xf]
      %v1031 = vld [vmem:[%s2 + $0x18] sm:$0xf]
      %v1032 = vld [vmem:[%s2 + $0x1c] sm:$0xf]
      %v1041 = vunpack.c.l.b16 %v1025
      %v1042 = vunpack.c.l.b16 %v1026
      %v1043 = vunpack.c.l.b16 %v1027
      %v1044 = vunpack.c.l.b16 %v1028
      %v1045 = vunpack.c.l.b16 %v1029
      %v1046 = vunpack.c.l.b16 %v1030
      %v1047 = vunpack.c.l.b16 %v1031
      %v1048 = vunpack.c.l.b16 %v1032
      %v1049 = vpack.c.b16 %v1042, %v1041
      %v1050 = vpack.c.b16 %v1044, %v1043
      %v1051 = vpack.c.b16 %v1046, %v1045
      %v1052 = vpack.c.b16 %v1048, %v1047
      %v1058 = vsel %vm968, %v1017, 0
      %v1061 = vsel %vm968, %v1018, 0
      %v1064 = vsel %vm968, %v1019, 0
      %v1067 = vsel %vm968, %v1020, 0
      %v1070 = vsel %vm968, %v1021, 0
      %v1073 = vsel %vm968, %v1022, 0
      %v1076 = vsel %vm968, %v1023, 0
      %v1079 = vsel %vm968, %v1024, 0
      %1081 = vmatprep.subr.bf16.mxu0 0
      %1082 = vmatpush1.bf16.msra.mxu0 0
      %1083 = vmatprep.subr.bf16.mxu0 0
      %1084 = vmatpush1.bf16.msra.mxu0 0
      %1085 = vmatprep.subr.bf16.mxu0 0
      %1086 = vmatpush1.bf16.msra.mxu0 0
      %1087 = vmatprep.subr.bf16.mxu0 0
      %1088 = vmatpush1.bf16.msra.mxu0 0
      %1089 = vmatprep.subr.bf16.mxu0 0
      %1090 = vmatpush1.bf16.msra.mxu0 %v1052
      %1091 = vmatprep.subr.bf16.mxu0 0
      %1092 = vmatpush1.bf16.msra.mxu0 %v1051
      %1093 = vmatprep.subr.bf16.mxu0 0
      %1094 = vmatpush1.bf16.msra.mxu0 %v1050
      %1095 = vmatprep.subr.bf16.mxu0 0
      %1096 = vmatpush1.bf16.msra.mxu0 %v1049
      %1097 = vmatprep.subr.bf16.mxu0 0
      %1098 = vmatpush2.bf16.msra.mxu0 0
      %1099 = vmatprep.subr.bf16.mxu0 0
      %1100 = vmatpush2.bf16.msra.mxu0 0
      %1101 = vmatprep.subr.bf16.mxu0 0
      %1102 = vmatpush2.bf16.msra.mxu0 0
      %1103 = vmatprep.subr.bf16.mxu0 0
      %1104 = vmatpush2.bf16.msra.mxu0 0
      %1105 = vmatprep.subr.bf16.mxu0 0
      %1106 = vmatpush2.bf16.msra.mxu0 0
      %1107 = vmatprep.subr.bf16.mxu0 0
      %1108 = vmatpush2.bf16.msra.mxu0 0
      %1109 = vmatprep.subr.bf16.mxu0 0
      %1110 = vmatpush2.bf16.msra.mxu0 0
      %1111 = vmatprep.subr.bf16.mxu0 0
      %1112 = vmatpush2.bf16.msra.mxu0 0
      %1113 = vmatprep.mubr.bf16.mxu0 0
      %1114 = vmatmul.mubr.bf16.gmra.mxu0 %v1058
      %v1115 = vpop.f32.mrf.mxu0
      %v1116 = vadd.f32 0.0, %v1115
      %v1117 = vpop.f32.mrf.mxu0
      %v1118 = vpop.f32.mrf.mxu0
      %v1119 = vadd.f32 0.0, %v1118
      %v1120 = vpop.f32.mrf.mxu0
      %1121 = vmatprep.mubr.bf16.mxu0 0
      %1122 = vmatmul.mubr.bf16.gmra.mxu0 %v1061
      %v1123 = vpop.f32.mrf.mxu0
      %v1124 = vadd.f32 0.0, %v1123
      %v1125 = vpop.f32.mrf.mxu0
      %v1126 = vpop.f32.mrf.mxu0
      %v1127 = vadd.f32 0.0, %v1126
      %v1128 = vpop.f32.mrf.mxu0
      %1129 = vmatprep.mubr.bf16.mxu0 0
      %1130 = vmatmul.mubr.bf16.gmra.mxu0 %v1064
      %v1131 = vpop.f32.mrf.mxu0
      %v1132 = vadd.f32 0.0, %v1131
      %v1133 = vpop.f32.mrf.mxu0
      %v1134 = vpop.f32.mrf.mxu0
      %v1135 = vadd.f32 0.0, %v1134
      %v1136 = vpop.f32.mrf.mxu0
      %1137 = vmatprep.mubr.bf16.mxu0 0
      %1138 = vmatmul.mubr.bf16.gmra.mxu0 %v1067
      %v1139 = vpop.f32.mrf.mxu0
      %v1140 = vadd.f32 0.0, %v1139
      %v1141 = vpop.f32.mrf.mxu0
      %v1142 = vpop.f32.mrf.mxu0
      %v1143 = vadd.f32 0.0, %v1142
      %v1144 = vpop.f32.mrf.mxu0
      %1145 = vmatprep.mubr.bf16.mxu0 0
      %1146 = vmatmul.mubr.bf16.gmra.mxu0 %v1070
      %v1147 = vpop.f32.mrf.mxu0
      %v1148 = vadd.f32 0.0, %v1147
      %v1149 = vpop.f32.mrf.mxu0
      %v1150 = vpop.f32.mrf.mxu0
      %v1151 = vadd.f32 0.0, %v1150
      %v1152 = vpop.f32.mrf.mxu0
      %1153 = vmatprep.mubr.bf16.mxu0 0
      %1154 = vmatmul.mubr.bf16.gmra.mxu0 %v1073
      %v1155 = vpop.f32.mrf.mxu0
      %v1156 = vadd.f32 0.0, %v1155
      %v1157 = vpop.f32.mrf.mxu0
      %v1158 = vpop.f32.mrf.mxu0
      %v1159 = vadd.f32 0.0, %v1158
      %v1160 = vpop.f32.mrf.mxu0
      %1161 = vmatprep.mubr.bf16.mxu0 0
      %1162 = vmatmul.mubr.bf16.gmra.mxu0 %v1076
      %v1163 = vpop.f32.mrf.mxu0
      %v1164 = vadd.f32 0.0, %v1163
      %v1165 = vpop.f32.mrf.mxu0
      %v1166 = vpop.f32.mrf.mxu0
      %v1167 = vadd.f32 0.0, %v1166
      %v1168 = vpop.f32.mrf.mxu0
      %1169 = vmatprep.mubr.bf16.mxu0 0
      %1170 = vmatmul.mubr.bf16.gmra.mxu0 %v1079
      %v1171 = vpop.f32.mrf.mxu0
      %v1172 = vadd.f32 0.0, %v1171
      %v1173 = vpop.f32.mrf.mxu0
      %v1174 = vpop.f32.mrf.mxu0
      %v1175 = vadd.f32 0.0, %v1174
      %v1176 = vpop.f32.mrf.mxu0
      %1177 = vdwg.mxu0
      %v1178 = vrcp.pop %v971
      %v1179 = vrcp.pop %v974
      %v1180 = vrcp.pop %v977
      %v1181 = vrcp.pop %v980
      %v1182 = vrcp.pop %v983
      %v1183 = vrcp.pop %v986
      %v1184 = vrcp.pop %v989
      %v1185 = vrcp.pop %v992
      %v1186 = vrcp.pop %v995
      %v1187 = vrcp.pop %v998
      %v1188 = vrcp.pop %v1001
      %v1189 = vrcp.pop %v1004
      %v1190 = vrcp.pop %v1007
      %v1191 = vrcp.pop %v1010
      %v1192 = vrcp.pop %v1013
      %v1193 = vrcp.pop %v1016
      %v1194 = vmul.f32 %v1116, %v1178
      %v1195 = vmul.f32 %v1119, %v1179
      %v1196 = vmul.f32 %v1124, %v1180
      %v1197 = vmul.f32 %v1127, %v1181
      %v1198 = vmul.f32 %v1132, %v1182
      %v1199 = vmul.f32 %v1135, %v1183
      %v1200 = vmul.f32 %v1140, %v1184
      %v1201 = vmul.f32 %v1143, %v1185
      %v1202 = vmul.f32 %v1148, %v1186
      %v1203 = vmul.f32 %v1151, %v1187
      %v1204 = vmul.f32 %v1156, %v1188
      %v1205 = vmul.f32 %v1159, %v1189
      %v1206 = vmul.f32 %v1164, %v1190
      %v1207 = vmul.f32 %v1167, %v1191
      %v1208 = vmul.f32 %v1172, %v1192
      %v1209 = vmul.f32 %v1175, %v1193
      %vm1210 = vcmask 261120
      %1211 = vst.msk [vmem:[%s172] sm:$0xff] %vm1210, %v1194
      %1212 = vst.msk [vmem:[%s172 + $0x8] sm:$0xff] %vm1210, %v1195
      %1213 = vst.msk [vmem:[%s172 + $0x10] sm:$0xff] %vm1210, %v1196
      %1214 = vst.msk [vmem:[%s172 + $0x18] sm:$0xff] %vm1210, %v1197
      %1215 = vst.msk [vmem:[%s172 + $0x20] sm:$0xff] %vm1210, %v1198
      %1216 = vst.msk [vmem:[%s172 + $0x28] sm:$0xff] %vm1210, %v1199
      %1217 = vst.msk [vmem:[%s172 + $0x30] sm:$0xff] %vm1210, %v1200
      %1218 = vst.msk [vmem:[%s172 + $0x38] sm:$0xff] %vm1210, %v1201
      %1219 = vst.msk [vmem:[%s172 + $0x40] sm:$0xff] %vm1210, %v1202
      %1220 = vst.msk [vmem:[%s172 + $0x48] sm:$0xff] %vm1210, %v1203
      %1221 = vst.msk [vmem:[%s172 + $0x50] sm:$0xff] %vm1210, %v1204
      %1222 = vst.msk [vmem:[%s172 + $0x58] sm:$0xff] %vm1210, %v1205
      %1223 = vst.msk [vmem:[%s172 + $0x60] sm:$0xff] %vm1210, %v1206
      %1224 = vst.msk [vmem:[%s172 + $0x68] sm:$0xff] %vm1210, %v1207
      %1225 = vst.msk [vmem:[%s172 + $0x70] sm:$0xff] %vm1210, %v1208
      %1226 = vst.msk [vmem:[%s172 + $0x78] sm:$0xff] %vm1210, %v1209
      %s1227 = smul.u32 16, %s14
      %p1228 = scmp.lt.s32.totalorder %s1227, 31
      %s1229 = scalar_select %p1228, %s1227, 31
      %s1230 = smul.addr %s1229, 8
      %s1231 = scalar_lea.vmem %s3, %s1230
      // Predicated region
      $region33: #{tpu_custom_call.1} parent=31 // pred_check
        %p1232 = pneg %p100
      $region34: #{tpu_custom_call.1} parent=31 // pred_check_branch
        %1234 = sbr.rel (%p1232) target = $region36
      $region35: #{tpu_custom_call.1} parent=31 // pred_region
        %s1235 = smul.u32 16, %s14
      $region36: #{tpu_custom_call.1} parent=31 // pred_fallthru
        _
    $region32: #{tpu_custom_call.1} parent=5 // pred_fallthru
      _
    %p1236 = scmp.le.s32.totalorder 2, %s9
    // Predicated region
    $region37: #{tpu_custom_call.1} parent=5 // pred_check
      %p1237 = pneg %p1236
    $region38: #{tpu_custom_call.1} parent=5 // pred_check_branch
      %1239 = sbr.rel (%p1237) target = $region40
    $region39: #{tpu_custom_call.1} parent=5 // pred_region
      %s1240 = ssub.s32 %s9, 2
      // Predicated region
      $region41: #{tpu_custom_call.1} parent=39 // pred_check
        %p1241 = pneg %p106
      $region42: #{tpu_custom_call.1} parent=39 // pred_check_branch
        %1243 = sbr.rel (%p1241) target = $region44
      $region43: #{tpu_custom_call.1} parent=39 // pred_region
        %s1244 = smul.u32 16, %s15
        %p1245 = scmp.lt.s32.totalorder %s1244, 31
        %s1246 = scalar_select %p1245, %s1244, 31
        %s1247 = smul.addr %s1246, 8
        %s1248 = scalar_lea.vmem %s3, %s1247
      $region44: #{tpu_custom_call.1} parent=39 // pred_fallthru
        _
    $region40: #{tpu_custom_call.1} parent=5 // pred_fallthru
      _
  $region6: #{tpu_custom_call.1} parent=0 // loop_footer
    %s13 = sadd.s32 1, %s9
  $region7: #{tpu_custom_call.1} parent=0 // loop_footer_branch
    %8 = sbr.rel target = $region3
  $region8: #{tpu_custom_call.1} parent=0 // loop_exit
    _

</llo_original>
